<compile_context>
chip_gen: v6e
topology: v6e:2x2x1
jax: 0.10.0
libtpu: 0.0.40
codegen_flags: <defaults>
</compile_context>

<pallas_src>
import functools
import numpy as np
import jax
import jax.numpy as jnp
from jax.experimental import pallas as pl
from jax.experimental.pallas import tpu as pltpu


# --------------------- pooled separable bilinear weights (plain JAX) --------------------- #
def _pooled_weights(start, bin_sz, n_bins, samp, size):
    """W[p, t] s.t. out[p] = sum_t W[p, t] * feat[t] == mean of `samp` bilinear samples/bin."""
    p_idx = jnp.arange(n_bins, dtype=jnp.float32)[:, None]   # [n_bins, 1]
    t_idx = jnp.arange(size, dtype=jnp.float32)[None, :]     # [1, size]
    w = jnp.zeros((n_bins, size), jnp.float32)
    for s in range(samp):                                     # small static loop
        coord = start + p_idx * bin_sz + (s + 0.5) * bin_sz / samp
        valid = (coord >= -1.0) & (coord <= size)
        c = jnp.maximum(coord, 0.0)
        low = jnp.floor(c)
        at_edge = low >= (size - 1)
        low = jnp.minimum(low, float(size - 1))
        high = jnp.where(at_edge, float(size - 1), low + 1.0)
        l = jnp.where(at_edge, 0.0, c - low)
        h = 1.0 - l
        w_s = (h * (t_idx == low).astype(jnp.float32)
               + l * (t_idx == high).astype(jnp.float32))
        w = w + jnp.where(valid, w_s, 0.0)
    return w / float(samp)


def _make_weights(boxes, spatial_scale, ph, pw, samp, H, W, aligned):
    """boxes [K, 4] (x1, y1, x2, y2) -> (Wy [K, PH, H], Wx [K, PW, W]) in f32."""
    offset = 0.5 if aligned else 0.0
    x1 = boxes[:, 0] * spatial_scale - offset
    y1 = boxes[:, 1] * spatial_scale - offset
    x2 = boxes[:, 2] * spatial_scale - offset
    y2 = boxes[:, 3] * spatial_scale - offset
    roi_w = x2 - x1
    roi_h = y2 - y1
    if not aligned:
        roi_w = jnp.maximum(roi_w, 1.0)
        roi_h = jnp.maximum(roi_h, 1.0)
    bin_h = roi_h / ph
    bin_w = roi_w / pw
    wy = jax.vmap(lambda s, b: _pooled_weights(s, b, ph, samp, H))(y1, bin_h)
    wx = jax.vmap(lambda s, b: _pooled_weights(s, b, pw, samp, W))(x1, bin_w)
    return wy, wx


def _pick_channel_tile(C, H, W, itemsize, budget_bytes=24 << 20):
    """Channel tile TC for the feature block: full C when small or not lane-tileable,
    else the largest multiple-of-128 divisor of C whose double-buffered block fits the
    VMEM budget (keeps the pipeline within v7x's 64 MiB / v5e's scoped limit)."""
    if C % 128 != 0 or 2 * H * W * C * itemsize <= budget_bytes:
        # TODO(synk): huge images with C not a multiple of 128 cannot be lane-tiled; they
        # fall back to a full-C block and rely on vmem_limit_bytes.
        return C
    best = 128
    t = 128
    while t <= C:
        if C % t == 0 and 2 * H * W * t * itemsize <= budget_bytes:
            best = t
        t += 128
    return best


# --------------------------------------- kernel --------------------------------------- #
def _roi_align_kernel(bidx_ref, wy_ref, wx_ref, feat_ref, out_ref, *, width, c_tile):
    del bidx_ref                                   # consumed only by the index_maps
    wy = wy_ref[0]                                 # [PH, H]
    wx = wx_ref[0]                                 # [PW, W]
    feat2d = feat_ref[0, 0]                        # [H, W*TC]  channels-last, lane-dense
    ph = wy.shape[0]

    # Contract H on the MXU: one lane-dense matmul over all channels in the tile.
    t = jnp.dot(wy, feat2d, preferred_element_type=jnp.float32)        # [PH, W*TC]
    # Bring W out of the lane dim (small intermediate: PH*W*TC elements).
    t = t.reshape(ph, width, c_tile)
    t = jnp.transpose(t, (1, 0, 2)).reshape(width, ph * c_tile)        # [W, PH*TC]
    # Contract W on the MXU (no wx.T needed).
    o = jnp.dot(wx, t, preferred_element_type=jnp.float32)             # [PW, PH*TC]
    out_ref[0, 0] = o.astype(out_ref.dtype)


# --------------------------------------- wrapper --------------------------------------- #
def roi_align(features, rois, output_size, spatial_scale=1.0,
              sampling_ratio=-1, aligned=False):
    if sampling_ratio <= 0:
        # TODO(synk): sampling_ratio=-1 (per-ROI adaptive ceil(roi/bin) sample grid) needs
        # data-dependent sample counts; only fixed sampling_ratio > 0 is supported.
        raise NotImplementedError("Pallas RoIAlign requires sampling_ratio > 0")
    if isinstance(output_size, (tuple, list)):
        ph, pw = int(output_size[0]), int(output_size[1])
    else:
        ph = pw = int(output_size)

    N, C, H, W = features.shape
    K = rois.shape[0]
    itemsize = jnp.dtype(features.dtype).itemsize

    # --- group ROIs by image so consecutive grid steps reuse the resident feature block ---
    batch_idx = rois[:, 0].astype(jnp.int32)
    order = jnp.argsort(batch_idx)
    inv_order = jnp.argsort(order)
    bidx_sorted = jnp.take(batch_idx, order, axis=0)                     # [K] scalar prefetch
    boxes_sorted = jnp.take(rois[:, 1:5].astype(jnp.float32), order, axis=0)

    # --- pooled separable bilinear weights, precomputed in plain JAX (vmapped) ---
    wy, wx = _make_weights(boxes_sorted, float(spatial_scale), ph, pw,
                           int(sampling_ratio), H, W, bool(aligned))     # [K,PH,H],[K,PW,W]
    if features.dtype == jnp.bfloat16:                                   # bf16 MXU rate,
        wy = wy.astype(jnp.bfloat16)                                     # f32 accumulation
        wx = wx.astype(jnp.bfloat16)

    # --- channels-last, channel-tiled feature layout: [N, C//TC, H, W*TC] ---
    c_tile = _pick_channel_tile(C, H, W, itemsize)
    n_ct = C // c_tile
    feat_r = (features.reshape(N, n_ct, c_tile, H, W)
              .transpose(0, 1, 3, 4, 2)
              .reshape(N, n_ct, H, W * c_tile))

    blk_bytes = (H * W * c_tile * itemsize            # feature block
                 + ph * H * 4 + pw * W * 4            # weight blocks
                 + pw * ph * c_tile * itemsize)       # output block
    vmem_limit = int(min(max(2 * blk_bytes + (4 << 20), 32 << 20), 128 << 20))

    kernel = functools.partial(_roi_align_kernel, width=W, c_tile=c_tile)

    grid_spec = pltpu.PrefetchScalarGridSpec(
        num_scalar_prefetch=1,
        grid=(n_ct, K),                                  # K innermost: feature reuse
        in_specs=[
            pl.BlockSpec((1, ph, H), lambda ct, k, bidx: (k, 0, 0)),            # Wy
            pl.BlockSpec((1, pw, W), lambda ct, k, bidx: (k, 0, 0)),            # Wx
            pl.BlockSpec((1, 1, H, W * c_tile),
                         lambda ct, k, bidx: (bidx[k], ct, 0, 0)),              # features
        ],
        out_specs=pl.BlockSpec((1, 1, pw, ph * c_tile),
                               lambda ct, k, bidx: (k, ct, 0, 0)),              # lane-dense
    )

    out_flat = pl.pallas_call(
        kernel,
        out_shape=jax.ShapeDtypeStruct((K, n_ct, pw, ph * c_tile), features.dtype),
        grid_spec=grid_spec,
        compiler_params=pltpu.CompilerParams(
            dimension_semantics=("parallel", "parallel"),
            vmem_limit_bytes=vmem_limit),
    )(bidx_sorted, wy, wx, feat_r)

    # [K, CT, PW, PH*TC] -> [K, C, PH, PW], then undo the batch-sort permutation.
    out = out_flat.reshape(K, n_ct, pw, ph, c_tile)
    out = out.transpose(0, 1, 4, 3, 2).reshape(K, C, ph, pw)
    return jnp.take(out, inv_order, axis=0)


class RoIAlign:
    def __init__(self, output_size, spatial_scale, sampling_ratio, aligned=False):
        self.output_size = output_size
        self.spatial_scale = spatial_scale
        self.sampling_ratio = sampling_ratio
        self.aligned = aligned

    def __call__(self, input, rois):
        return roi_align(input, rois, self.output_size, self.spatial_scale,
                         self.sampling_ratio, self.aligned)


# ---------------- pure NumPy reference (torchvision roi_align semantics) ---------------- #
def _bilinear_ref(img, y, x, H, W):
    if y < -1.0 or y > H or x < -1.0 or x > W:
        return 0.0
    y = max(y, 0.0); x = max(x, 0.0)
    y_low = int(y); x_low = int(x)
    if y_low >= H - 1:
        y_high = y_low = H - 1
        y = float(y_low)
    else:
        y_high = y_low + 1
    if x_low >= W - 1:
        x_high = x_low = W - 1
        x = float(x_low)
    else:
        x_high = x_low + 1
    ly = y - y_low; lx = x - x_low
    hy = 1.0 - ly; hx = 1.0 - lx
    return (hy * hx * img[y_low, x_low] + hy * lx * img[y_low, x_high]
            + ly * hx * img[y_high, x_low] + ly * lx * img[y_high, x_high])


def _roi_align_ref(feat, rois, output_size, spatial_scale, sampling_ratio, aligned):
    N, C, H, W = feat.shape
    PH, PW = output_size
    K = rois.shape[0]
    S = sampling_ratio
    off = 0.5 if aligned else 0.0
    out = np.zeros((K, C, PH, PW), np.float32)
    for k in range(K):
        b = int(rois[k, 0])
        x1 = rois[k, 1] * spatial_scale - off
        y1 = rois[k, 2] * spatial_scale - off
        x2 = rois[k, 3] * spatial_scale - off
        y2 = rois[k, 4] * spatial_scale - off
        rw, rh = x2 - x1, y2 - y1
        if not aligned:
            rw, rh = max(rw, 1.0), max(rh, 1.0)
        bh, bw = rh / PH, rw / PW
        for c in range(C):
            img = feat[b, c]
            for phh in range(PH):
                for pww in range(PW):
                    acc = 0.0
                    for iy in range(S):
                        y = y1 + phh * bh + (iy + 0.5) * bh / S
                        for ix in range(S):
                            x = x1 + pww * bw + (ix + 0.5) * bw / S
                            acc += _bilinear_ref(img, y, x, H, W)
                    out[k, c, phh, pww] = acc / (S * S)
    return out


if __name__ == "__main__":
    key = jax.random.PRNGKey(0)
    N, C, H, W = 2, 4, 16, 16
    K = 4
    PH, PW = 4, 4
    spatial_scale = 0.5
    sampling_ratio = 2
    aligned = False

    kf, kb = jax.random.split(key)
    features = jax.random.normal(kf, (N, C, H, W), dtype=jnp.float32)

    # rois rows: (batch_idx, x1, y1, x2, y2) in input-image coordinates.
    batch = jnp.array([0, 1, 0, 1], dtype=jnp.float32)
    xy1 = jax.random.uniform(kb, (K, 2), minval=0.0, maxval=18.0)
    wh = jax.random.uniform(jax.random.fold_in(kb, 1), (K, 2), minval=2.0, maxval=12.0)
    xy2 = jnp.minimum(xy1 + wh, 31.0)
    rois = jnp.concatenate([batch[:, None], xy1, xy2], axis=1).astype(jnp.float32)

    mod = RoIAlign((PH, PW), spatial_scale, sampling_ratio, aligned)
    out = jax.block_until_ready(mod(features, rois))

    ref = _roi_align_ref(np.asarray(features), np.asarray(rois),
                         (PH, PW), spatial_scale, sampling_ratio, aligned)
    np.testing.assert_allclose(np.asarray(out), ref, atol=1e-4, rtol=1e-4)
    print("KERNEL_OK")
</pallas_src>

<mosaic_0001>
module attributes {stable_mosaic.version = 11 : i64} {
  func.func @_roi_align_kernel(%arg0: i32, %arg1: i32, %arg2: memref<4xi32, #tpu.memory_space<smem>>, %arg3: memref<1x4x16xf32, #tpu.memory_space<vmem>>, %arg4: memref<1x4x16xf32, #tpu.memory_space<vmem>>, %arg5: memref<1x1x16x64xf32, #tpu.memory_space<vmem>>, %arg6: memref<1x1x4x16xf32, #tpu.memory_space<vmem>>) attributes {dimension_semantics = [#tpu.dimension_semantics<parallel>, #tpu.dimension_semantics<parallel>], iteration_bounds = array<i64: 1, 4>, scalar_prefetch = 1 : i64, scratch_operands = 0 : i64, tpu.core_type = #tpu.core_type<tc>, window_params = [{transform_indices = @transform_0, window_bounds = array<i64: 1, 4, 16>}, {transform_indices = @transform_1, window_bounds = array<i64: 1, 4, 16>}, {transform_indices = @transform_2, window_bounds = array<i64: 1, 1, 16, 64>}, {transform_indices = @transform_3, window_bounds = array<i64: 1, 1, 4, 16>}]} {
    %c0 = arith.constant 0 : index
    %c0_0 = arith.constant 0 : index
    %c0_1 = arith.constant 0 : index
    %0 = vector.load %arg3[%c0, %c0_0, %c0_1] : memref<1x4x16xf32, #tpu.memory_space<vmem>>, vector<1x4x16xf32>
    %1 = vector.shape_cast %0 : vector<1x4x16xf32> to vector<4x16xf32>
    %c0_2 = arith.constant 0 : index
    %c0_3 = arith.constant 0 : index
    %c0_4 = arith.constant 0 : index
    %2 = vector.load %arg4[%c0_2, %c0_3, %c0_4] : memref<1x4x16xf32, #tpu.memory_space<vmem>>, vector<1x4x16xf32>
    %3 = vector.shape_cast %2 : vector<1x4x16xf32> to vector<4x16xf32>
    %c0_5 = arith.constant 0 : index
    %c0_6 = arith.constant 0 : index
    %c0_7 = arith.constant 0 : index
    %c0_8 = arith.constant 0 : index
    %4 = vector.load %arg5[%c0_5, %c0_6, %c0_7, %c0_8] : memref<1x1x16x64xf32, #tpu.memory_space<vmem>>, vector<1x1x16x64xf32>
    %5 = vector.shape_cast %4 : vector<1x1x16x64xf32> to vector<16x64xf32>
    %cst = arith.constant dense<0.000000e+00> : vector<4x64xf32>
    %6 = tpu.matmul %1, %5, %cst {dimension_numbers = #tpu.dot_dimension_numbers<[1], [0], [0], [1], [0, 0, 1, 1], [], []>} : vector<4x16xf32>, vector<16x64xf32>, vector<4x64xf32> -> vector<4x64xf32>
    %7 = vector.shape_cast %6 : vector<4x64xf32> to vector<4x16x4xf32>
    %8 = tpu.transpose %7, [1, 0, 2] : vector<4x16x4xf32> -> vector<16x4x4xf32>
    %9 = vector.shape_cast %8 : vector<16x4x4xf32> to vector<16x16xf32>
    %cst_9 = arith.constant dense<0.000000e+00> : vector<4x16xf32>
    %10 = tpu.matmul %3, %9, %cst_9 {dimension_numbers = #tpu.dot_dimension_numbers<[1], [0], [0], [1], [0, 0, 1, 1], [], []>} : vector<4x16xf32>, vector<16x16xf32>, vector<4x16xf32> -> vector<4x16xf32>
    %c0_10 = arith.constant 0 : index
    %c0_11 = arith.constant 0 : index
    %c0_12 = arith.constant 0 : index
    %c0_13 = arith.constant 0 : index
    %11 = vector.load %arg6[%c0_10, %c0_11, %c0_12, %c0_13] : memref<1x1x4x16xf32, #tpu.memory_space<vmem>>, vector<1x1x4x16xf32>
    %12 = vector.shape_cast %11 : vector<1x1x4x16xf32> to vector<4x16xf32>
    %13 = vector.shape_cast %10 : vector<4x16xf32> to vector<1x1x4x16xf32>
    tpu.vector_store %arg6[%c0_10, %c0_11, %c0_12, %c0_13], %13 {strides = array<i32>} : memref<1x1x4x16xf32, #tpu.memory_space<vmem>>, vector<1x1x4x16xf32>,
    return
  }
  func.func @transform_0(%arg0: i32, %arg1: i32, %arg2: memref<4xi32, #tpu.memory_space<smem>>) -> (i32, i32, i32) {
    %c0_i32 = arith.constant 0 : i32
    %c0_i32_0 = arith.constant 0 : i32
    %c0_i32_1 = arith.constant 0 : i32
    return %arg1, %c0_i32, %c0_i32_0 : i32, i32, i32
  }
  func.func @transform_1(%arg0: i32, %arg1: i32, %arg2: memref<4xi32, #tpu.memory_space<smem>>) -> (i32, i32, i32) {
    %c0_i32 = arith.constant 0 : i32
    %c0_i32_0 = arith.constant 0 : i32
    %c0_i32_1 = arith.constant 0 : i32
    return %arg1, %c0_i32, %c0_i32_0 : i32, i32, i32
  }
  func.func @transform_2(%arg0: i32, %arg1: i32, %arg2: memref<4xi32, #tpu.memory_space<smem>>) -> (i32, i32, i32, i32) {
    %0 = arith.index_cast %arg1 : i32 to index
    %1 = memref.load %arg2[%0] : memref<4xi32, #tpu.memory_space<smem>>
    %c0_i32 = arith.constant 0 : i32
    %c0_i32_0 = arith.constant 0 : i32
    %c0_i32_1 = arith.constant 0 : i32
    return %1, %arg0, %c0_i32, %c0_i32_0 : i32, i32, i32, i32
  }
  func.func @transform_3(%arg0: i32, %arg1: i32, %arg2: memref<4xi32, #tpu.memory_space<smem>>) -> (i32, i32, i32, i32) {
    %c0_i32 = arith.constant 0 : i32
    %c0_i32_0 = arith.constant 0 : i32
    %c0_i32_1 = arith.constant 0 : i32
    return %arg1, %arg0, %c0_i32, %c0_i32_0 : i32, i32, i32, i32
  }
}

</mosaic_0001>

<llo_original>
// kernel: tpu_custom_call.1
$region0: #{tpu_custom_call.1}
  #allocation0 [shape = 'u32[]', space=smem, size = 0x4, offset = 0x4, fixed_abs, tag = 'smem constant byte address 0x4 - core index']
  #allocation1 [shape = 'u32[144,128]{1,0:T(1,128)}', space=vmem, size = 0x12000, scoped, tag = 'internal scratch']
  #allocation2 [shape = 's32[1]{0}', space=sflag, size = 0x4, scoped, tag = 'scoped memory for tpu_custom_call.1']
  #allocation3 [shape = 'u8[512]{0}', space=smem, size = 0x200, scoped, tag = 'prefetched SMEM operand 0']
  %s0 = inlined_call_operand.hbm [shape: s32[4], index: 0, kind: input, shape index: {}]
  %s1 = inlined_call_operand.hbm [shape: f32[4,4,16], index: 1, kind: input, shape index: {}]
  %s2 = inlined_call_operand.hbm [shape: f32[4,4,16], index: 2, kind: input, shape index: {}]
  %s3 = inlined_call_operand.hbm [shape: f32[2,1,16,64], index: 3, kind: input, shape index: {}]
  %s4 = inlined_call_operand.hbm [shape: f32[4,1,4,16], index: 4, kind: output, shape index: {}]
  %s5 = sld [smem:[#allocation0]]
  $region57: #{tpu_custom_call.1} parent=0
    _
  %s7 = ssub.s32 1, %s5
  %s8 = scalar_select 0, %s7, %s5
  %10 = dma.hbm_to_smem %s0, 16, [#allocation3], [#allocation2]
  %11 = dma.done [#allocation2], 16
  %12 = sfence
  $region1: #{tpu_custom_call.1} parent=0
    #allocation4 [shape = 'u8[4096]{0}', space=vmem, size = 0x1000, scoped, tag = 'input window, operand 1']
    #allocation5 [shape = 's32[2]{0}', space=sflag, size = 0x8, scoped, tag = 'scoped memory for tpu_custom_call.1']
    #allocation6 [shape = 's32[2]{0}', space=sflag, size = 0x8, scoped, tag = 'scoped memory for tpu_custom_call.1']
    #allocation7 [shape = 'u8[4096]{0}', space=vmem, size = 0x1000, scoped, tag = 'input window, operand 2']
    #allocation8 [shape = 's32[2]{0}', space=sflag, size = 0x8, scoped, tag = 'scoped memory for tpu_custom_call.1']
    #allocation9 [shape = 'u8[16384]{0}', space=vmem, size = 0x4000, scoped, tag = 'input window, operand 3']
    #allocation10 [shape = 'u8[4096]{0}', space=vmem, size = 0x1000, scoped, tag = 'output window, operand 0']
    %13 = vsyncpa [#allocation5], 0
    %s14 = scalar_lea.sflag [#allocation5], 1
    %15 = vsyncpa %s14, 0
    %16 = vsyncpa [#allocation8], 0
    %s17 = scalar_lea.sflag [#allocation8], 1
    %18 = vsyncpa %s17, 0
    %19 = vsyncpa [#allocation6], 0
    %s20 = scalar_lea.sflag [#allocation6], 1
    %21 = vsyncpa %s20, 0
    loop: start=0, step=1, limit=6
    $region2: #{tpu_custom_call.1} parent=1 // loop_pre_header
      _
    $region3: #{tpu_custom_call.1} parent=1 // loop_header
      %s23 = sphi 0, %s27
      %p24 = scmp.ge.s32.totalorder %s23, 6
      %s30 = sphi 0, %s42
      %s31 = sphi 0, %s38
      %s32 = sphi 0, %s30
      %s33 = sphi 0, %s31
      %s34 = sphi 0, %s32
      %s35 = sphi 0, %s33
      %s45 = sphi 0, %s47
      %s48 = sphi 0, %s45
      %s49 = sphi 0, %s48
      %s65 = sphi 0, %s49
      %s71 = sphi 0, %s73
      %s74 = sphi 0, %s71
      %s75 = sphi 0, %s74
      %s91 = sphi 0, %s75
      %s101 = sphi 0, %s103
      %s104 = sphi 0, %s101
      %s105 = sphi 0, %s104
      %s121 = sphi 0, %s105
      %s129 = sphi 0, %s131
      %s132 = sphi 0, %s129
      %s133 = sphi 0, %s132
      %s149 = sphi 0, %s133
    $region4: #{tpu_custom_call.1} parent=1 // loop_header_branch
      %26 = sbr.rel (%p24) target = $region8
    $region5: #{tpu_custom_call.1} parent=1 // loop_body
      %s28 = ssub.s32 %s23, 1
      %s29 = ssub.s32 %s23, 2
      %s36 = sadd.s32 1, %s31
      %p37 = scmp.ge.s32.totalorder %s36, 4
      %s38 = scalar_select %p37, 0, %s36
      %s39 = sadd.s32 1, %s30
      %s40 = scalar_select %p37, %s39, %s30
      %p41 = scmp.ge.s32.totalorder %s40, 1
      %s42 = scalar_select %p41, 0, %s40
      %s43 = ssub.s32 %s31, %s38
      %p44 = scmp.eq.s32.totalorder %s43, 0
      %s46 = sadd.s32 %s45, 1
      %s47 = scalar_select %p44, %s45, %s46
      %p50 = pneg %p44
      %p51 = scmp.eq.s32.totalorder %s23, 3
      %p52 = por %p50, %p51
      %p53 = scmp.ne.s32.totalorder %s45, %s48
      %p54 = scmp.eq.s32.totalorder %s23, 0
      %p55 = por %p53, %p54
      %p56 = scmp.ne.s32.totalorder %s45, %s48
      %p57 = scmp.eq.s32.totalorder %s28, 3
      %p58 = por %p56, %p57
      %p59 = scmp.ne.s32.totalorder %s48, %s49
      %p60 = scmp.eq.s32.totalorder %s28, 0
      %p61 = por %p59, %p60
      %p62 = scmp.ne.s32.totalorder %s48, %s49
      %p63 = scmp.eq.s32.totalorder %s29, 3
      %p64 = por %p62, %p63
      %p66 = scmp.ne.s32.totalorder %s49, %s65
      %p67 = scmp.eq.s32.totalorder %s29, 0
      %p68 = por %p66, %p67
      %s69 = ssub.s32 %s31, %s38
      %p70 = scmp.eq.s32.totalorder %s69, 0
      %s72 = sadd.s32 %s71, 1
      %s73 = scalar_select %p70, %s71, %s72
      %p76 = pneg %p70
      %p77 = scmp.eq.s32.totalorder %s23, 3
      %p78 = por %p76, %p77
      %p79 = scmp.ne.s32.totalorder %s71, %s74
      %p80 = scmp.eq.s32.totalorder %s23, 0
      %p81 = por %p79, %p80
      %p82 = scmp.ne.s32.totalorder %s71, %s74
      %p83 = scmp.eq.s32.totalorder %s28, 3
      %p84 = por %p82, %p83
      %p85 = scmp.ne.s32.totalorder %s74, %s75
      %p86 = scmp.eq.s32.totalorder %s28, 0
      %p87 = por %p85, %p86
      %p88 = scmp.ne.s32.totalorder %s74, %s75
      %p89 = scmp.eq.s32.totalorder %s29, 3
      %p90 = por %p88, %p89
      %p92 = scmp.ne.s32.totalorder %s75, %s91
      %p93 = scmp.eq.s32.totalorder %s29, 0
      %p94 = por %p92, %p93
      %s95 = sld [smem:[#allocation3 + %s31]]
      %s96 = sld [smem:[#allocation3 + %s38]]
      %s97 = ssub.s32 %s95, %s96
      %s98 = ssub.s32 %s30, %s42
      %s99 = sor.u32 %s97, %s98
      %p100 = scmp.eq.s32.totalorder %s99, 0
      %s102 = sadd.s32 %s101, 1
      %s103 = scalar_select %p100, %s101, %s102
      %p106 = pneg %p100
      %p107 = scmp.eq.s32.totalorder %s23, 3
      %p108 = por %p106, %p107
      %p109 = scmp.ne.s32.totalorder %s101, %s104
      %p110 = scmp.eq.s32.totalorder %s23, 0
      %p111 = por %p109, %p110
      %p112 = scmp.ne.s32.totalorder %s101, %s104
      %p113 = scmp.eq.s32.totalorder %s28, 3
      %p114 = por %p112, %p113
      %p115 = scmp.ne.s32.totalorder %s104, %s105
      %p116 = scmp.eq.s32.totalorder %s28, 0
      %p117 = por %p115, %p116
      %p118 = scmp.ne.s32.totalorder %s104, %s105
      %p119 = scmp.eq.s32.totalorder %s29, 3
      %p120 = por %p118, %p119
      %p122 = scmp.ne.s32.totalorder %s105, %s121
      %p123 = scmp.eq.s32.totalorder %s29, 0
      %p124 = por %p122, %p123
      %s125 = ssub.s32 %s31, %s38
      %s126 = ssub.s32 %s30, %s42
      %s127 = sor.u32 %s125, %s126
      %p128 = scmp.eq.s32.totalorder %s127, 0
      %s130 = sadd.s32 %s129, 1
      %s131 = scalar_select %p128, %s129, %s130
      %p134 = pneg %p128
      %p135 = scmp.eq.s32.totalorder %s23, 3
      %p136 = por %p134, %p135
      %p137 = scmp.ne.s32.totalorder %s129, %s132
      %p138 = scmp.eq.s32.totalorder %s23, 0
      %p139 = por %p137, %p138
      %p140 = scmp.ne.s32.totalorder %s129, %s132
      %p141 = scmp.eq.s32.totalorder %s28, 3
      %p142 = por %p140, %p141
      %p143 = scmp.ne.s32.totalorder %s132, %s133
      %p144 = scmp.eq.s32.totalorder %s28, 0
      %p145 = por %p143, %p144
      %p146 = scmp.ne.s32.totalorder %s132, %s133
      %p147 = scmp.eq.s32.totalorder %s29, 3
      %p148 = por %p146, %p147
      %p150 = scmp.ne.s32.totalorder %s133, %s149
      %p151 = scmp.eq.s32.totalorder %s29, 0
      %p152 = por %p150, %p151
      %p153 = scmp.le.s32.totalorder 1, %s23
      %p154 = scmp.lt.s32.totalorder %s23, 5
      %p155 = pnand %p153, %p154
      %p156 = pneg %p155
      // Predicated region
      $region9: #{tpu_custom_call.1} parent=5 // pred_check
        _
      $region10: #{tpu_custom_call.1} parent=5 // pred_check_branch
        %158 = sbr.rel (%p155) target = $region12
      $region11: #{tpu_custom_call.1} parent=5 // pred_region
        %s159 = ssub.s32 %s23, 1
      $region12: #{tpu_custom_call.1} parent=5 // pred_fallthru
        _
      %p160 = scmp.lt.s32.totalorder %s23, 4
      // Predicated region
      $region13: #{tpu_custom_call.1} parent=5 // pred_check
        %p161 = pneg %p160
      $region14: #{tpu_custom_call.1} parent=5 // pred_check_branch
        %163 = sbr.rel (%p161) target = $region16
      $region15: #{tpu_custom_call.1} parent=5 // pred_region
        // Predicated region
        $region17: #{tpu_custom_call.1} parent=15 // pred_check
          %p164 = pneg %p55
        $region18: #{tpu_custom_call.1} parent=15 // pred_check_branch
          %166 = sbr.rel (%p164) target = $region20
        $region19: #{tpu_custom_call.1} parent=15 // pred_region
          %s167 = sand.u32 %s45, 1
          %s168 = scalar_lea.sflag [#allocation5], %s167
          %s169 = sand.u32 %s45, 1
          %s170 = smul.addr %s169, 4
          %s171 = scalar_lea.vmem [#allocation4], %s170
          %s173 = ssub.s32 64, 64
          %174 = vsyncadd %s168, %s173
          %s175 = smul.addr %s31, 64
          %s176 = scalar_lea.hbm %s1, %s175
          %s178 = sshll.u32 %s171, 4
          %s179 = int_to_ptr.vmem [resolvable:$true] %s178
          %181 = dma.hbm_to_vmem [thread:$0]  %s176, 64, %s179, %s168
        $region20: #{tpu_custom_call.1} parent=15 // pred_fallthru
          _
        // Predicated region
        $region21: #{tpu_custom_call.1} parent=15 // pred_check
          %p182 = pneg %p81
        $region22: #{tpu_custom_call.1} parent=15 // pred_check_branch
          %184 = sbr.rel (%p182) target = $region24
        $region23: #{tpu_custom_call.1} parent=15 // pred_region
          %s185 = sand.u32 %s23, 1
          %s186 = scalar_lea.sflag [#allocation8], %s185
          %s187 = sand.u32 %s71, 1
          %s188 = smul.addr %s187, 4
          %s189 = scalar_lea.vmem [#allocation7], %s188
          %s191 = ssub.s32 64, 64
          %192 = vsyncadd %s186, %s191
          %s193 = smul.addr %s31, 64
          %s194 = scalar_lea.hbm %s2, %s193
          %s196 = sshll.u32 %s189, 4
          %s197 = int_to_ptr.vmem [resolvable:$true] %s196
          %199 = dma.hbm_to_vmem [thread:$0]  %s194, 64, %s197, %s186
        $region24: #{tpu_custom_call.1} parent=15 // pred_fallthru
          _
        // Predicated region
        $region25: #{tpu_custom_call.1} parent=15 // pred_check
          %p200 = pneg %p111
        $region26: #{tpu_custom_call.1} parent=15 // pred_check_branch
          %202 = sbr.rel (%p200) target = $region28
        $region27: #{tpu_custom_call.1} parent=15 // pred_region
          %s203 = sand.u32 %s23, 1
          %s204 = scalar_lea.sflag [#allocation8], %s203
          %s205 = sand.u32 %s101, 1
          %s206 = smul.addr %s205, 16
          %s207 = scalar_lea.vmem [#allocation9], %s206
          %s208 = sld [smem:[#allocation3 + %s31]]
          %s210 = ssub.s32 256, 256
          %211 = vsyncadd %s204, %s210
          %s212 = smul.addr %s30, 2
          %s213 = smul.addr %s208, 2
          %s214 = sadd.s32 %s212, %s213
          %s215 = smul.addr %s214, 128
          %s216 = scalar_lea.hbm %s3, %s215
          %s217 = sshll.u32 %s207, 4
          %s218 = int_to_ptr.vmem [resolvable:$true] %s217
          %223 = dma.hbm_to_vmem [thread:$0]  %s216, 256, %s218, %s204, 128, 128, 8
        $region28: #{tpu_custom_call.1} parent=15 // pred_fallthru
          _
      $region16: #{tpu_custom_call.1} parent=5 // pred_fallthru
        _
      %p224 = scmp.le.s32.totalorder 1, %s23
      %p225 = scmp.lt.s32.totalorder %s23, 5
      %p226 = pnand %p224, %p225
      %p227 = pneg %p226
      // Predicated region
      $region29: #{tpu_custom_call.1} parent=5 // pred_check
        _
      $region30: #{tpu_custom_call.1} parent=5 // pred_check_branch
        %229 = sbr.rel (%p226) target = $region32
      $region31: #{tpu_custom_call.1} parent=5 // pred_region
        %s230 = ssub.s32 %s23, 1
        %s231 = sand.u32 %s48, 1
        %s232 = scalar_lea.sflag [#allocation5], %s231
        %s233 = sand.u32 %s48, 1
        %s234 = smul.addr %s233, 4
        %s235 = scalar_lea.vmem [#allocation4], %s234
        // Predicated region
        $region33: #{tpu_custom_call.1} parent=31 // pred_check
          %p236 = pneg %p61
        $region34: #{tpu_custom_call.1} parent=31 // pred_check_branch
          %238 = sbr.rel (%p236) target = $region36
        $region35: #{tpu_custom_call.1} parent=31 // pred_region
          %239 = dma.done %s232, 64
        $region36: #{tpu_custom_call.1} parent=31 // pred_fallthru
          _
        %s240 = sand.u32 %s28, 1
        %s241 = scalar_lea.sflag [#allocation8], %s240
        %s242 = sand.u32 %s74, 1
        %s243 = smul.addr %s242, 4
        %s244 = scalar_lea.vmem [#allocation7], %s243
        // Predicated region
        $region37: #{tpu_custom_call.1} parent=31 // pred_check
          %p245 = pneg %p87
        $region38: #{tpu_custom_call.1} parent=31 // pred_check_branch
          %247 = sbr.rel (%p245) target = $region40
        $region39: #{tpu_custom_call.1} parent=31 // pred_region
          %248 = dma.done %s241, 64
        $region40: #{tpu_custom_call.1} parent=31 // pred_fallthru
          _
        %s249 = sand.u32 %s28, 1
        %s250 = scalar_lea.sflag [#allocation8], %s249
        %s251 = sand.u32 %s104, 1
        %s252 = smul.addr %s251, 16
        %s253 = scalar_lea.vmem [#allocation9], %s252
        // Predicated region
        $region41: #{tpu_custom_call.1} parent=31 // pred_check
          %p254 = pneg %p117
        $region42: #{tpu_custom_call.1} parent=31 // pred_check_branch
          %256 = sbr.rel (%p254) target = $region44
        $region43: #{tpu_custom_call.1} parent=31 // pred_region
          %257 = dma.done %s250, 256
        $region44: #{tpu_custom_call.1} parent=31 // pred_fallthru
          _
        %s258 = sand.u32 %s48, 1
        %s259 = scalar_lea.sflag [#allocation5], %s258
        %s260 = sand.u32 %s48, 1
        %s261 = smul.addr %s260, 4
        %s262 = scalar_lea.vmem [#allocation4], %s261
        %p263 = pneg %p61
        %p264 = pneg %p58
        %s265 = sand.u32 %s28, 1
        %s266 = scalar_lea.sflag [#allocation8], %s265
        %s267 = sand.u32 %s74, 1
        %s268 = smul.addr %s267, 4
        %s269 = scalar_lea.vmem [#allocation7], %s268
        %p270 = pneg %p87
        %p271 = pneg %p84
        %s272 = sand.u32 %s28, 1
        %s273 = scalar_lea.sflag [#allocation8], %s272
        %s274 = sand.u32 %s104, 1
        %s275 = smul.addr %s274, 16
        %s276 = scalar_lea.vmem [#allocation9], %s275
        %p277 = pneg %p117
        %p278 = pneg %p114
        %p279 = pneg %p145
        %p280 = pneg %p142
        %s281 = sand.u32 %s132, 1
        %s282 = scalar_lea.sflag [#allocation6], %s281
        %s283 = sand.u32 %s132, 1
        %s284 = smul.addr %s283, 4
        %s285 = scalar_lea.vmem [#allocation10], %s284
        %s286 = sld [smem:[#allocation3 + %s33]]
        %v287 = vld [vmem:[%s235] sm:$0xf]
        %v288 = vld [vmem:[%s244] sm:$0xf]
        %v289 = vld [vmem:[%s253] sm:$0xff]
        %v290 = vld [vmem:[%s253 + $0x8] sm:$0xff]
        %vm291 = vcmask 130048
        %v293 = vsel %vm291, %v287, 0
        %295 = vmatprep.subr.mxu0 0.0
        %296 = vmatpush1.msra.mxu0 0.0
        %297 = vmatprep.subr.mxu0 0.0
        %298 = vmatpush1.msra.mxu0 0.0
        %299 = vmatprep.subr.mxu0 0.0
        %300 = vmatpush1.msra.mxu0 0.0
        %301 = vmatprep.subr.mxu0 0.0
        %302 = vmatpush1.msra.mxu0 0.0
        %303 = vmatprep.subr.mxu0 0.0
        %304 = vmatpush1.msra.mxu0 0.0
        %305 = vmatprep.subr.mxu0 0.0
        %306 = vmatpush1.msra.mxu0 0.0
        %307 = vmatprep.subr.mxu0 0.0
        %308 = vmatpush1.msra.mxu0 0.0
        %309 = vmatprep.subr.mxu0 0.0
        %310 = vmatpush1.msra.mxu0 0.0
        %311 = vmatprep.subr.mxu0 0.0
        %312 = vmatpush1.msra.mxu0 0.0
        %313 = vmatprep.subr.mxu0 0.0
        %314 = vmatpush1.msra.mxu0 0.0
        %315 = vmatprep.subr.mxu0 0.0
        %316 = vmatpush1.msra.mxu0 0.0
        %317 = vmatprep.subr.mxu0 0.0
        %318 = vmatpush1.msra.mxu0 0.0
        %319 = vmatprep.subr.mxu0 0.0
        %320 = vmatpush1.msra.mxu0 0.0
        %321 = vmatprep.subr.mxu0 0.0
        %322 = vmatpush1.msra.mxu0 0.0
        %323 = vmatprep.subr.mxu0 0.0
        %324 = vmatpush1.msra.mxu0 %v290
        %325 = vmatprep.subr.mxu0 0.0
        %326 = vmatpush1.msra.mxu0 %v289
        %327 = vmatprep.subr.mxu0 0.0
        %328 = vmatpush2.msra.mxu0 0.0
        %329 = vmatprep.subr.mxu0 0.0
        %330 = vmatpush2.msra.mxu0 0.0
        %331 = vmatprep.subr.mxu0 0.0
        %332 = vmatpush2.msra.mxu0 0.0
        %333 = vmatprep.subr.mxu0 0.0
        %334 = vmatpush2.msra.mxu0 0.0
        %335 = vmatprep.subr.mxu0 0.0
        %336 = vmatpush2.msra.mxu0 0.0
        %337 = vmatprep.subr.mxu0 0.0
        %338 = vmatpush2.msra.mxu0 0.0
        %339 = vmatprep.subr.mxu0 0.0
        %340 = vmatpush2.msra.mxu0 0.0
        %341 = vmatprep.subr.mxu0 0.0
        %342 = vmatpush2.msra.mxu0 0.0
        %343 = vmatprep.subr.mxu0 0.0
        %344 = vmatpush2.msra.mxu0 0.0
        %345 = vmatprep.subr.mxu0 0.0
        %346 = vmatpush2.msra.mxu0 0.0
        %347 = vmatprep.subr.mxu0 0.0
        %348 = vmatpush2.msra.mxu0 0.0
        %349 = vmatprep.subr.mxu0 0.0
        %350 = vmatpush2.msra.mxu0 0.0
        %351 = vmatprep.subr.mxu0 0.0
        %352 = vmatpush2.msra.mxu0 0.0
        %353 = vmatprep.subr.mxu0 0.0
        %354 = vmatpush2.msra.mxu0 0.0
        %355 = vmatprep.subr.mxu0 0.0
        %356 = vmatpush2.msra.mxu0 0.0
        %357 = vmatprep.subr.mxu0 0.0
        %358 = vmatpush2.msra.mxu0 0.0
        %359 = vmatprep.mubr.f32.mxu0 0.0
        %360 = vmatmul.mubr.f32.gmra.mxu0 %v293
        %v361 = vpop.f32.mrf.mxu0
        %v362 = vadd.f32 0.0, %v361
        %v363 = vpop.f32.mrf.mxu0
        %364 = vdwg.mxu0
        %366 = vrot.lane.b32.xlu0 %v362, 124
        %v367 = vpop.permute.xlu0 %366
        %369 = vrot.lane.b32.xlu0 %v362, 120
        %v370 = vpop.permute.xlu0 %369
        %372 = vrot.lane.b32.xlu0 %v362, 116
        %v373 = vpop.permute.xlu0 %372
        %375 = vrot.lane.b32.xlu0 %v362, 112
        %v376 = vpop.permute.xlu0 %375
        %378 = vrot.lane.b32.xlu0 %v362, 108
        %v379 = vpop.permute.xlu0 %378
        %381 = vrot.lane.b32.xlu0 %v362, 104
        %v382 = vpop.permute.xlu0 %381
        %384 = vrot.lane.b32.xlu0 %v362, 100
        %v385 = vpop.permute.xlu0 %384
        %387 = vrot.lane.b32.xlu0 %v362, 96
        %v388 = vpop.permute.xlu0 %387
        %390 = vrot.lane.b32.xlu0 %v362, 92
        %v391 = vpop.permute.xlu0 %390
        %393 = vrot.lane.b32.xlu0 %v362, 88
        %v394 = vpop.permute.xlu0 %393
        %396 = vrot.lane.b32.xlu0 %v362, 84
        %v397 = vpop.permute.xlu0 %396
        %399 = vrot.lane.b32.xlu0 %v362, 80
        %v400 = vpop.permute.xlu0 %399
        %402 = vrot.lane.b32.xlu0 %v362, 76
        %v403 = vpop.permute.xlu0 %402
        %405 = vrot.lane.b32.xlu0 %v362, 72
        %v406 = vpop.permute.xlu0 %405
        %408 = vrot.lane.b32.xlu0 %v362, 68
        %v409 = vpop.permute.xlu0 %408
        %v411 = vcombine.low %v362, %v370
        %v413 = vunpack.c.l.s4 1983009808
        %v414 = vunpack.c.0.s8 %v413
        %v415 = vlaneseq
        %v416 = vshrl.u32 %v415, 7
        %v417 = vsub.s32 %v414, %v416
        %v418 = vrot.slane %v411, %v417
        %v419 = vcombine.low %v367, %v373
        %v421 = vunpack.c.l.s4 1983009808
        %v422 = vunpack.c.0.s8 %v421
        %v423 = vlaneseq
        %v424 = vshrl.u32 %v423, 7
        %v425 = vsub.s32 %v422, %v424
        %v426 = vrot.slane %v419, %v425
        %v427 = vcombine.low %v376, %v382
        %v429 = vunpack.c.l.s4 1983009808
        %v430 = vunpack.c.0.s8 %v429
        %v431 = vlaneseq
        %v432 = vshrl.u32 %v431, 7
        %v433 = vsub.s32 %v430, %v432
        %v434 = vrot.slane %v427, %v433
        %v435 = vcombine.low %v379, %v385
        %v437 = vunpack.c.l.s4 1983009808
        %v438 = vunpack.c.0.s8 %v437
        %v439 = vlaneseq
        %v440 = vshrl.u32 %v439, 7
        %v441 = vsub.s32 %v438, %v440
        %v442 = vrot.slane %v435, %v441
        %v443 = vcombine.low %v418, %v426
        %v444 = vcombine.high %v418, %v426
        %v446 = vunpack.c.l.s4 1934713408
        %v447 = vunpack.c.0.s8 %v446
        %v448 = vlaneseq
        %v449 = vshrl.u32 %v448, 7
        %v450 = vsub.s32 %v447, %v449
        %v451 = vrot.slane %v443, %v450
        %v453 = vunpack.c.l.s4 1934713408
        %v454 = vunpack.c.0.s8 %v453
        %v455 = vlaneseq
        %v456 = vshrl.u32 %v455, 7
        %v457 = vsub.s32 %v454, %v456
        %v458 = vrot.slane %v444, %v457
        %v459 = vcombine.low %v434, %v442
        %v460 = vcombine.high %v434, %v442
        %v462 = vunpack.c.l.s4 1934713408
        %v463 = vunpack.c.0.s8 %v462
        %v464 = vlaneseq
        %v465 = vshrl.u32 %v464, 7
        %v466 = vsub.s32 %v463, %v465
        %v467 = vrot.slane %v459, %v466
        %v469 = vunpack.c.l.s4 1934713408
        %v470 = vunpack.c.0.s8 %v469
        %v471 = vlaneseq
        %v472 = vshrl.u32 %v471, 7
        %v473 = vsub.s32 %v470, %v472
        %v474 = vrot.slane %v460, %v473
        %v475 = vcombine.low %v451, %v467
        %v476 = vcombine.high %v451, %v467
        %v477 = vcombine.low %v458, %v474
        %v478 = vcombine.high %v458, %v474
        %v479 = vcombine.low %v388, %v394
        %v481 = vunpack.c.l.s4 1983009808
        %v482 = vunpack.c.0.s8 %v481
        %v483 = vlaneseq
        %v484 = vshrl.u32 %v483, 7
        %v485 = vsub.s32 %v482, %v484
        %v486 = vrot.slane %v479, %v485
        %v487 = vcombine.low %v391, %v397
        %v489 = vunpack.c.l.s4 1983009808
        %v490 = vunpack.c.0.s8 %v489
        %v491 = vlaneseq
        %v492 = vshrl.u32 %v491, 7
        %v493 = vsub.s32 %v490, %v492
        %v494 = vrot.slane %v487, %v493
        %v495 = vcombine.low %v400, %v406
        %v497 = vunpack.c.l.s4 1983009808
        %v498 = vunpack.c.0.s8 %v497
        %v499 = vlaneseq
        %v500 = vshrl.u32 %v499, 7
        %v501 = vsub.s32 %v498, %v500
        %v502 = vrot.slane %v495, %v501
        %v503 = vcombine.low %v403, %v409
        %v505 = vunpack.c.l.s4 1983009808
        %v506 = vunpack.c.0.s8 %v505
        %v507 = vlaneseq
        %v508 = vshrl.u32 %v507, 7
        %v509 = vsub.s32 %v506, %v508
        %v510 = vrot.slane %v503, %v509
        %v511 = vcombine.low %v486, %v494
        %v512 = vcombine.high %v486, %v494
        %v514 = vunpack.c.l.s4 1934713408
        %v515 = vunpack.c.0.s8 %v514
        %v516 = vlaneseq
        %v517 = vshrl.u32 %v516, 7
        %v518 = vsub.s32 %v515, %v517
        %v519 = vrot.slane %v511, %v518
        %v521 = vunpack.c.l.s4 1934713408
        %v522 = vunpack.c.0.s8 %v521
        %v523 = vlaneseq
        %v524 = vshrl.u32 %v523, 7
        %v525 = vsub.s32 %v522, %v524
        %v526 = vrot.slane %v512, %v525
        %v527 = vcombine.low %v502, %v510
        %v528 = vcombine.high %v502, %v510
        %v530 = vunpack.c.l.s4 1934713408
        %v531 = vunpack.c.0.s8 %v530
        %v532 = vlaneseq
        %v533 = vshrl.u32 %v532, 7
        %v534 = vsub.s32 %v531, %v533
        %v535 = vrot.slane %v527, %v534
        %v537 = vunpack.c.l.s4 1934713408
        %v538 = vunpack.c.0.s8 %v537
        %v539 = vlaneseq
        %v540 = vshrl.u32 %v539, 7
        %v541 = vsub.s32 %v538, %v540
        %v542 = vrot.slane %v528, %v541
        %v543 = vcombine.low %v519, %v535
        %v544 = vcombine.high %v519, %v535
        %v545 = vcombine.low %v526, %v542
        %v546 = vcombine.high %v526, %v542
        %v547 = vcombine.low %v475, %v477
        %v548 = vcombine.high %v475, %v477
        %v550 = vunpack.c.l.s4 1983009808
        %v551 = vunpack.c.0.s8 %v550
        %v552 = vlaneseq
        %v553 = vshrl.u32 %v552, 7
        %v554 = vsub.s32 %v551, %v553
        %v555 = vrot.slane %v547, %v554
        %v557 = vunpack.c.l.s4 1983009808
        %v558 = vunpack.c.0.s8 %v557
        %v559 = vlaneseq
        %v560 = vshrl.u32 %v559, 7
        %v561 = vsub.s32 %v558, %v560
        %v562 = vrot.slane %v548, %v561
        %v563 = vcombine.low %v476, %v478
        %v564 = vcombine.high %v476, %v478
        %v566 = vunpack.c.l.s4 1983009808
        %v567 = vunpack.c.0.s8 %v566
        %v568 = vlaneseq
        %v569 = vshrl.u32 %v568, 7
        %v570 = vsub.s32 %v567, %v569
        %v571 = vrot.slane %v563, %v570
        %v573 = vunpack.c.l.s4 1983009808
        %v574 = vunpack.c.0.s8 %v573
        %v575 = vlaneseq
        %v576 = vshrl.u32 %v575, 7
        %v577 = vsub.s32 %v574, %v576
        %v578 = vrot.slane %v564, %v577
        %v579 = vcombine.low %v555, %v571
        %v580 = vcombine.high %v555, %v571
        %v582 = vunpack.c.l.s4 1934713408
        %v583 = vunpack.c.0.s8 %v582
        %v584 = vlaneseq
        %v585 = vshrl.u32 %v584, 7
        %v586 = vsub.s32 %v583, %v585
        %v587 = vrot.slane %v579, %v586
        %v589 = vunpack.c.l.s4 1934713408
        %v590 = vunpack.c.0.s8 %v589
        %v591 = vlaneseq
        %v592 = vshrl.u32 %v591, 7
        %v593 = vsub.s32 %v590, %v592
        %v594 = vrot.slane %v580, %v593
        %v595 = vcombine.low %v562, %v578
        %v596 = vcombine.high %v562, %v578
        %v598 = vunpack.c.l.s4 1934713408
        %v599 = vunpack.c.0.s8 %v598
        %v600 = vlaneseq
        %v601 = vshrl.u32 %v600, 7
        %v602 = vsub.s32 %v599, %v601
        %v603 = vrot.slane %v595, %v602
        %v605 = vunpack.c.l.s4 1934713408
        %v606 = vunpack.c.0.s8 %v605
        %v607 = vlaneseq
        %v608 = vshrl.u32 %v607, 7
        %v609 = vsub.s32 %v606, %v608
        %v610 = vrot.slane %v596, %v609
        %v611 = vcombine.high %v587, 0.0
        %v612 = vcombine.high %v594, 0.0
        %v613 = vcombine.high %v603, 0.0
        %v614 = vcombine.high %v610, 0.0
        %v615 = vcombine.low %v543, %v545
        %v616 = vcombine.high %v543, %v545
        %v618 = vunpack.c.l.s4 1983009808
        %v619 = vunpack.c.0.s8 %v618
        %v620 = vlaneseq
        %v621 = vshrl.u32 %v620, 7
        %v622 = vsub.s32 %v619, %v621
        %v623 = vrot.slane %v615, %v622
        %v625 = vunpack.c.l.s4 1983009808
        %v626 = vunpack.c.0.s8 %v625
        %v627 = vlaneseq
        %v628 = vshrl.u32 %v627, 7
        %v629 = vsub.s32 %v626, %v628
        %v630 = vrot.slane %v616, %v629
        %v631 = vcombine.low %v544, %v546
        %v632 = vcombine.high %v544, %v546
        %v634 = vunpack.c.l.s4 1983009808
        %v635 = vunpack.c.0.s8 %v634
        %v636 = vlaneseq
        %v637 = vshrl.u32 %v636, 7
        %v638 = vsub.s32 %v635, %v637
        %v639 = vrot.slane %v631, %v638
        %v641 = vunpack.c.l.s4 1983009808
        %v642 = vunpack.c.0.s8 %v641
        %v643 = vlaneseq
        %v644 = vshrl.u32 %v643, 7
        %v645 = vsub.s32 %v642, %v644
        %v646 = vrot.slane %v632, %v645
        %v647 = vcombine.low %v623, %v639
        %v648 = vcombine.high %v623, %v639
        %v650 = vunpack.c.l.s4 1934713408
        %v651 = vunpack.c.0.s8 %v650
        %v652 = vlaneseq
        %v653 = vshrl.u32 %v652, 7
        %v654 = vsub.s32 %v651, %v653
        %v655 = vrot.slane %v647, %v654
        %v657 = vunpack.c.l.s4 1934713408
        %v658 = vunpack.c.0.s8 %v657
        %v659 = vlaneseq
        %v660 = vshrl.u32 %v659, 7
        %v661 = vsub.s32 %v658, %v660
        %v662 = vrot.slane %v648, %v661
        %v663 = vcombine.low %v630, %v646
        %v664 = vcombine.high %v630, %v646
        %v666 = vunpack.c.l.s4 1934713408
        %v667 = vunpack.c.0.s8 %v666
        %v668 = vlaneseq
        %v669 = vshrl.u32 %v668, 7
        %v670 = vsub.s32 %v667, %v669
        %v671 = vrot.slane %v663, %v670
        %v673 = vunpack.c.l.s4 1934713408
        %v674 = vunpack.c.0.s8 %v673
        %v675 = vlaneseq
        %v676 = vshrl.u32 %v675, 7
        %v677 = vsub.s32 %v674, %v676
        %v678 = vrot.slane %v664, %v677
        %v679 = vcombine.high %v655, 0.0
        %v680 = vcombine.high %v662, 0.0
        %v681 = vcombine.high %v671, 0.0
        %v682 = vcombine.high %v678, 0.0
        %v683 = vcombine.low %v587, %v594
        %v685 = vunpack.c.l.s4 1983009808
        %v686 = vunpack.c.0.s8 %v685
        %v687 = vlaneseq
        %v688 = vshrl.u32 %v687, 7
        %v689 = vsub.s32 %v686, %v688
        %v690 = vrot.slane %v683, %v689
        %v691 = vcombine.low %v611, %v612
        %v693 = vunpack.c.l.s4 1983009808
        %v694 = vunpack.c.0.s8 %v693
        %v695 = vlaneseq
        %v696 = vshrl.u32 %v695, 7
        %v697 = vsub.s32 %v694, %v696
        %v698 = vrot.slane %v691, %v697
        %v699 = vcombine.low %v603, %v610
        %v701 = vunpack.c.l.s4 1983009808
        %v702 = vunpack.c.0.s8 %v701
        %v703 = vlaneseq
        %v704 = vshrl.u32 %v703, 7
        %v705 = vsub.s32 %v702, %v704
        %v706 = vrot.slane %v699, %v705
        %v707 = vcombine.low %v613, %v614
        %v709 = vunpack.c.l.s4 1983009808
        %v710 = vunpack.c.0.s8 %v709
        %v711 = vlaneseq
        %v712 = vshrl.u32 %v711, 7
        %v713 = vsub.s32 %v710, %v712
        %v714 = vrot.slane %v707, %v713
        %v715 = vcombine.low %v690, %v698
        %v716 = vcombine.high %v690, %v698
        %v718 = vunpack.c.l.s4 1934713408
        %v719 = vunpack.c.0.s8 %v718
        %v720 = vlaneseq
        %v721 = vshrl.u32 %v720, 7
        %v722 = vsub.s32 %v719, %v721
        %v723 = vrot.slane %v715, %v722
        %v725 = vunpack.c.l.s4 1934713408
        %v726 = vunpack.c.0.s8 %v725
        %v727 = vlaneseq
        %v728 = vshrl.u32 %v727, 7
        %v729 = vsub.s32 %v726, %v728
        %v730 = vrot.slane %v716, %v729
        %v731 = vcombine.low %v706, %v714
        %v732 = vcombine.high %v706, %v714
        %v734 = vunpack.c.l.s4 1934713408
        %v735 = vunpack.c.0.s8 %v734
        %v736 = vlaneseq
        %v737 = vshrl.u32 %v736, 7
        %v738 = vsub.s32 %v735, %v737
        %v739 = vrot.slane %v731, %v738
        %v741 = vunpack.c.l.s4 1934713408
        %v742 = vunpack.c.0.s8 %v741
        %v743 = vlaneseq
        %v744 = vshrl.u32 %v743, 7
        %v745 = vsub.s32 %v742, %v744
        %v746 = vrot.slane %v732, %v745
        %v747 = vcombine.low %v723, %v739
        %v748 = vcombine.high %v723, %v739
        %v749 = vcombine.low %v730, %v746
        %v750 = vcombine.high %v730, %v746
        %v751 = vcombine.low %v655, %v662
        %v753 = vunpack.c.l.s4 1983009808
        %v754 = vunpack.c.0.s8 %v753
        %v755 = vlaneseq
        %v756 = vshrl.u32 %v755, 7
        %v757 = vsub.s32 %v754, %v756
        %v758 = vrot.slane %v751, %v757
        %v759 = vcombine.low %v679, %v680
        %v761 = vunpack.c.l.s4 1983009808
        %v762 = vunpack.c.0.s8 %v761
        %v763 = vlaneseq
        %v764 = vshrl.u32 %v763, 7
        %v765 = vsub.s32 %v762, %v764
        %v766 = vrot.slane %v759, %v765
        %v767 = vcombine.low %v671, %v678
        %v769 = vunpack.c.l.s4 1983009808
        %v770 = vunpack.c.0.s8 %v769
        %v771 = vlaneseq
        %v772 = vshrl.u32 %v771, 7
        %v773 = vsub.s32 %v770, %v772
        %v774 = vrot.slane %v767, %v773
        %v775 = vcombine.low %v681, %v682
        %v777 = vunpack.c.l.s4 1983009808
        %v778 = vunpack.c.0.s8 %v777
        %v779 = vlaneseq
        %v780 = vshrl.u32 %v779, 7
        %v781 = vsub.s32 %v778, %v780
        %v782 = vrot.slane %v775, %v781
        %v783 = vcombine.low %v758, %v766
        %v784 = vcombine.high %v758, %v766
        %v786 = vunpack.c.l.s4 1934713408
        %v787 = vunpack.c.0.s8 %v786
        %v788 = vlaneseq
        %v789 = vshrl.u32 %v788, 7
        %v790 = vsub.s32 %v787, %v789
        %v791 = vrot.slane %v783, %v790
        %v793 = vunpack.c.l.s4 1934713408
        %v794 = vunpack.c.0.s8 %v793
        %v795 = vlaneseq
        %v796 = vshrl.u32 %v795, 7
        %v797 = vsub.s32 %v794, %v796
        %v798 = vrot.slane %v784, %v797
        %v799 = vcombine.low %v774, %v782
        %v800 = vcombine.high %v774, %v782
        %v802 = vunpack.c.l.s4 1934713408
        %v803 = vunpack.c.0.s8 %v802
        %v804 = vlaneseq
        %v805 = vshrl.u32 %v804, 7
        %v806 = vsub.s32 %v803, %v805
        %v807 = vrot.slane %v799, %v806
        %v809 = vunpack.c.l.s4 1934713408
        %v810 = vunpack.c.0.s8 %v809
        %v811 = vlaneseq
        %v812 = vshrl.u32 %v811, 7
        %v813 = vsub.s32 %v810, %v812
        %v814 = vrot.slane %v800, %v813
        %v815 = vcombine.low %v791, %v807
        %v816 = vcombine.high %v791, %v807
        %v817 = vcombine.low %v798, %v814
        %v818 = vcombine.high %v798, %v814
        %821 = vrot.lane.b32.xlu0 %v748, 4
        %v822 = vpop.permute.xlu0 %821
        %823 = vrot.lane.b32.xlu0 %v816, 4
        %v824 = vpop.permute.xlu0 %823
        %829 = vrot.lane.b32.xlu0 %v749, 8
        %v830 = vpop.permute.xlu0 %829
        %831 = vrot.lane.b32.xlu0 %v817, 8
        %v832 = vpop.permute.xlu0 %831
        %837 = vrot.lane.b32.xlu0 %v750, 12
        %v838 = vpop.permute.xlu0 %837
        %839 = vrot.lane.b32.xlu0 %v818, 12
        %v840 = vpop.permute.xlu0 %839
        %vm843 = vcmask 31744
        %v844 = vsel %vm843, %v747, %v822
        %v845 = vsel %vm843, %v815, %v824
        %vm846 = vcmask 64512
        %v847 = vsel %vm846, %v844, %v830
        %v848 = vsel %vm846, %v845, %v832
        %vm849 = vcmask 97280
        %v850 = vsel %vm849, %v847, %v838
        %v851 = vsel %vm849, %v848, %v840
        %v853 = vsel %vm291, %v288, 0
        %855 = vmatprep.subr.mxu0 0.0
        %856 = vmatpush1.msra.mxu0 0.0
        %857 = vmatprep.subr.mxu0 0.0
        %858 = vmatpush1.msra.mxu0 0.0
        %859 = vmatprep.subr.mxu0 0.0
        %860 = vmatpush1.msra.mxu0 0.0
        %861 = vmatprep.subr.mxu0 0.0
        %862 = vmatpush1.msra.mxu0 0.0
        %863 = vmatprep.subr.mxu0 0.0
        %864 = vmatpush1.msra.mxu0 0.0
        %865 = vmatprep.subr.mxu0 0.0
        %866 = vmatpush1.msra.mxu0 0.0
        %867 = vmatprep.subr.mxu0 0.0
        %868 = vmatpush1.msra.mxu0 0.0
        %869 = vmatprep.subr.mxu0 0.0
        %870 = vmatpush1.msra.mxu0 0.0
        %871 = vmatprep.subr.mxu0 0.0
        %872 = vmatpush1.msra.mxu0 0.0
        %873 = vmatprep.subr.mxu0 0.0
        %874 = vmatpush1.msra.mxu0 0.0
        %875 = vmatprep.subr.mxu0 0.0
        %876 = vmatpush1.msra.mxu0 0.0
        %877 = vmatprep.subr.mxu0 0.0
        %878 = vmatpush1.msra.mxu0 0.0
        %879 = vmatprep.subr.mxu0 0.0
        %880 = vmatpush1.msra.mxu0 0.0
        %881 = vmatprep.subr.mxu0 0.0
        %882 = vmatpush1.msra.mxu0 0.0
        %883 = vmatprep.subr.mxu0 0.0
        %884 = vmatpush1.msra.mxu0 %v851
        %885 = vmatprep.subr.mxu0 0.0
        %886 = vmatpush1.msra.mxu0 %v850
        %887 = vmatprep.subr.mxu0 0.0
        %888 = vmatpush2.msra.mxu0 0.0
        %889 = vmatprep.subr.mxu0 0.0
        %890 = vmatpush2.msra.mxu0 0.0
        %891 = vmatprep.subr.mxu0 0.0
        %892 = vmatpush2.msra.mxu0 0.0
        %893 = vmatprep.subr.mxu0 0.0
        %894 = vmatpush2.msra.mxu0 0.0
        %895 = vmatprep.subr.mxu0 0.0
        %896 = vmatpush2.msra.mxu0 0.0
        %897 = vmatprep.subr.mxu0 0.0
        %898 = vmatpush2.msra.mxu0 0.0
        %899 = vmatprep.subr.mxu0 0.0
        %900 = vmatpush2.msra.mxu0 0.0
        %901 = vmatprep.subr.mxu0 0.0
        %902 = vmatpush2.msra.mxu0 0.0
        %903 = vmatprep.subr.mxu0 0.0
        %904 = vmatpush2.msra.mxu0 0.0
        %905 = vmatprep.subr.mxu0 0.0
        %906 = vmatpush2.msra.mxu0 0.0
        %907 = vmatprep.subr.mxu0 0.0
        %908 = vmatpush2.msra.mxu0 0.0
        %909 = vmatprep.subr.mxu0 0.0
        %910 = vmatpush2.msra.mxu0 0.0
        %911 = vmatprep.subr.mxu0 0.0
        %912 = vmatpush2.msra.mxu0 0.0
        %913 = vmatprep.subr.mxu0 0.0
        %914 = vmatpush2.msra.mxu0 0.0
        %915 = vmatprep.subr.mxu0 0.0
        %916 = vmatpush2.msra.mxu0 0.0
        %917 = vmatprep.subr.mxu0 0.0
        %918 = vmatpush2.msra.mxu0 0.0
        %919 = vmatprep.mubr.f32.mxu0 0.0
        %920 = vmatmul.mubr.f32.gmra.mxu0 %v853
        %v921 = vpop.f32.mrf.mxu0
        %v922 = vadd.f32 0.0, %v921
        %v923 = vpop.f32.mrf.mxu0
        %924 = vdwg.mxu0
        %vm925 = vcmask 125952
        %926 = vst.msk [vmem:[%s285] sm:$0xf] %vm925, %v922
        %s927 = sand.u32 %s132, 1
        %s928 = scalar_lea.sflag [#allocation6], %s927
        %s929 = sand.u32 %s132, 1
        %s930 = smul.addr %s929, 4
        %s931 = scalar_lea.vmem [#allocation10], %s930
        // Predicated region
        $region45: #{tpu_custom_call.1} parent=31 // pred_check
          %p932 = pneg %p142
        $region46: #{tpu_custom_call.1} parent=31 // pred_check_branch
          %934 = sbr.rel (%p932) target = $region48
        $region47: #{tpu_custom_call.1} parent=31 // pred_region
          %s936 = ssub.s32 64, 64
          %937 = vsyncadd %s928, %s936
          %s938 = sadd.s32 %s32, %s33
          %s939 = smul.addr %s938, 64
          %s940 = scalar_lea.hbm %s4, %s939
          %s942 = sshll.u32 %s931, 4
          %s943 = int_to_ptr.vmem [resolvable:$true] %s942
          %945 = dma.vmem_to_hbm [thread:$0]  %s943, 64, %s940, %s928
        $region48: #{tpu_custom_call.1} parent=31 // pred_fallthru
          _
      $region32: #{tpu_custom_call.1} parent=5 // pred_fallthru
        _
      %p946 = scmp.le.s32.totalorder 2, %s23
      // Predicated region
      $region49: #{tpu_custom_call.1} parent=5 // pred_check
        %p947 = pneg %p946
      $region50: #{tpu_custom_call.1} parent=5 // pred_check_branch
        %949 = sbr.rel (%p947) target = $region52
      $region51: #{tpu_custom_call.1} parent=5 // pred_region
        %s950 = ssub.s32 %s23, 2
        // Predicated region
        $region53: #{tpu_custom_call.1} parent=51 // pred_check
          %p951 = pneg %p148
        $region54: #{tpu_custom_call.1} parent=51 // pred_check_branch
          %953 = sbr.rel (%p951) target = $region56
        $region55: #{tpu_custom_call.1} parent=51 // pred_region
          %s954 = sand.u32 %s133, 1
          %s955 = scalar_lea.sflag [#allocation6], %s954
          %s956 = sand.u32 %s133, 1
          %s957 = smul.addr %s956, 4
          %s958 = scalar_lea.vmem [#allocation10], %s957
          %959 = dma.done %s955, 64
        $region56: #{tpu_custom_call.1} parent=51 // pred_fallthru
          _
      $region52: #{tpu_custom_call.1} parent=5 // pred_fallthru
        _
    $region6: #{tpu_custom_call.1} parent=1 // loop_footer
      %s27 = sadd.s32 1, %s23
    $region7: #{tpu_custom_call.1} parent=1 // loop_footer_branch
      %22 = sbr.rel target = $region3
    $region8: #{tpu_custom_call.1} parent=1 // loop_exit
      _
    %960 = vsyncpa [#allocation5], 1
    %s961 = scalar_lea.sflag [#allocation5], 1
    %962 = vsyncpa %s961, 1
    %963 = vsyncpa [#allocation8], 1
    %s964 = scalar_lea.sflag [#allocation8], 1
    %965 = vsyncpa %s964, 1
    %966 = vsyncpa [#allocation6], 1
    %s967 = scalar_lea.sflag [#allocation6], 1
    %968 = vsyncpa %s967, 1

</llo_original>
